<compile_context>
chip_gen: v7x
topology: tpu7x:2x2x1
jax: 0.10.0
libtpu: 0.0.40
codegen_flags: <defaults>
</compile_context>

<pallas_src>
import functools

import numpy as np

import jax
import jax.numpy as jnp
from jax.experimental import pallas as pl
from jax.experimental.pallas import tpu as pltpu

_LANE = 128          # vreg lane width
_SUBLANE = 8         # f32 sublane height
_MAX_TILE_B = 1024   # max batch rows per grid step


def _round_up(n, m):
    return ((n + m - 1) // m) * m


def _pick_tile_b(B):
    """Batch rows per grid step.

    * B <= 8: a single full-array block (block dim == array dim is always
      legal), grid = (1,).
    * otherwise: sublane-aligned tiles chosen so the grid has >= 2 steps
      (both v7x TensorCores get work), capped at _MAX_TILE_B so big batches
      amortize per-step overhead without blowing VMEM.
    """
    if B <= _SUBLANE:
        return B
    half = _round_up(-(-B // 2), _SUBLANE)
    return min(_MAX_TILE_B, half)


def _make_mlp_kernel(hidden_dims, eps):
    """Fused kernel. refs = [x, w0, b0, w1, b1, ..., w_last, b_last, out].

    hidden_dims[l] = TRUE (un-padded) output width of hidden layer l, used for
    exact InstanceNorm statistics over lane-padded activations.
    """
    n_layers = len(hidden_dims) + 1

    def kernel(*refs):
        x_ref = refs[0]
        o_ref = refs[-1]
        h = x_ref[...].astype(jnp.float32)
        for l in range(n_layers):
            w = refs[1 + 2 * l][...]     # (in_width, out_width), pre-transposed
            b = refs[2 + 2 * l][...]     # (1, out_width), f32
            # Cast activations to the weight dtype (f32 or bf16) for the MXU;
            # accumulate in f32.
            h = jnp.dot(h.astype(w.dtype), w,
                        preferred_element_type=jnp.float32) + b
            if l < n_layers - 1:
                # InstanceNorm1d over the TRUE feature count (two-pass form).
                # Padded lanes of h are exactly zero here (zero-padded weight
                # cols + bias), so the mean over all lanes is exact; the
                # centered term is masked so the variance is exact too.
                n_true = hidden_dims[l]
                inv_n = 1.0 / float(n_true)
                mean = jnp.sum(h, axis=-1, keepdims=True) * inv_n
                d = h - mean
                if h.shape[-1] > n_true:
                    lane = jax.lax.broadcasted_iota(jnp.int32, h.shape,
                                                    h.ndim - 1)
                    d = jnp.where(lane < n_true, d, 0.0)
                var = jnp.sum(d * d, axis=-1, keepdims=True) * inv_n
                # rsqrt runs on the EUP (separate slot); ReLU on the VPU.
                h = jnp.maximum(d * jax.lax.rsqrt(var + eps), 0.0)
        o_ref[...] = h.astype(o_ref.dtype)

    return kernel


def prepare_params(params, matmul_dtype=jnp.float32):
    """One-time prep (outside the hot path).

    params: list of (weight (out,in), bias (out,)) in PyTorch layout.

    Weights are transposed to (in, out); hidden-layer output widths are
    zero-padded to 128 lanes so intermediate vreg work and matmuls stay
    lane-dense. The FINAL layer keeps its true output width so the kernel can
    store the true (B, output_dim) result (no padded writeback + slice).
    Weights are stored in `matmul_dtype` (jnp.bfloat16 gives an MXU-rate /
    VMEM win at large `dim`); biases stay f32 (added post-matmul in f32).
    """
    prepped = []
    hidden_dims = []
    n = len(params)
    prev_width = params[0][0].shape[1]        # x keeps its true width
    for l, (w, b) in enumerate(params):
        out_dim, in_dim = w.shape
        is_last = (l == n - 1)
        out_width = out_dim if is_last else _round_up(out_dim, _LANE)
        wt = jnp.zeros((prev_width, out_width), matmul_dtype)
        wt = wt.at[:in_dim, :out_dim].set(jnp.transpose(w).astype(matmul_dtype))
        bp = jnp.zeros((1, out_width), jnp.float32)
        bp = bp.at[:, :out_dim].set(b.astype(jnp.float32).reshape(1, -1))
        prepped.append((wt, bp))
        if not is_last:
            hidden_dims.append(out_dim)
        prev_width = out_width
    return prepped, tuple(hidden_dims)


def _vmem_limit_bytes(tile_b, in_dim, out_dim, prepped_params):
    """Scoped-VMEM request derived from the actual working set (with slack)."""
    lane = lambda d: _round_up(d, _LANE)
    widths = [lane(in_dim)] + [lane(w.shape[1]) for (w, _) in prepped_params]
    est = 2 * tile_b * lane(in_dim) * 4            # double-buffered x tile
    est += 2 * tile_b * lane(out_dim) * 4          # double-buffered out tile
    est += 2 * sum(w.size * w.dtype.itemsize + b.size * b.dtype.itemsize
                   for (w, b) in prepped_params)   # resident weights (2 bufs)
    est += 4 * tile_b * max(widths) * 4            # live activations / temps
    return int(min(96 * 2**20, max(32 * 2**20, 2 * est)))


@functools.partial(jax.jit, static_argnames=("hidden_dims", "eps"))
def mlp_forward(x, prepped_params, hidden_dims, eps=1e-5):
    """Forward pass of the PyTorch MLP. x is NCHW-like; flattened as view(B,-1)."""
    B = x.shape[0]
    xf = x.reshape(B, -1).astype(jnp.float32)      # == x.view(x.size(0), -1)
    in_dim = xf.shape[1]
    out_dim = prepped_params[-1][0].shape[1]       # true output width

    tile_b = _pick_tile_b(B)
    grid = (pl.cdiv(B, tile_b),)

    inputs = [xf]
    in_specs = [pl.BlockSpec((tile_b, in_dim), lambda i: (i, 0))]
    for (w, b) in prepped_params:
        inputs += [w, b]
        in_specs.append(pl.BlockSpec(w.shape, lambda i: (0, 0)))   # resident
        in_specs.append(pl.BlockSpec(b.shape, lambda i: (0, 0)))   # resident
    out_spec = pl.BlockSpec((tile_b, out_dim), lambda i: (i, 0))   # true width

    flops = sum(2 * B * w.shape[0] * w.shape[1] for (w, _) in prepped_params)
    bytes_accessed = (xf.size * 4 + B * out_dim * 4
                      + sum(w.size * w.dtype.itemsize + b.size * 4
                            for (w, b) in prepped_params))
    cost = pl.CostEstimate(flops=flops,
                           transcendentals=B * len(hidden_dims),
                           bytes_accessed=bytes_accessed)

    kernel = _make_mlp_kernel(hidden_dims, eps)

    return pl.pallas_call(
        kernel,
        out_shape=jax.ShapeDtypeStruct((B, out_dim), jnp.float32),
        grid=grid,
        in_specs=in_specs,
        out_specs=out_spec,
        compiler_params=pltpu.CompilerParams(
            dimension_semantics=("parallel",),
            vmem_limit_bytes=_vmem_limit_bytes(tile_b, in_dim, out_dim,
                                               prepped_params)),
        cost_estimate=cost,
    )(*inputs)


def init_mlp_params(key, input_dim, output_dim, dim, n_blk):
    """Deterministic init mimicking PyTorch nn.Linear defaults (uniform)."""
    dims = [input_dim] + [dim] * (n_blk - 1) + [output_dim]
    params = []
    for i in range(n_blk):
        fan_in, fan_out = dims[i], dims[i + 1]
        key, kw, kb = jax.random.split(key, 3)
        bound = 1.0 / jnp.sqrt(float(fan_in))
        w = jax.random.uniform(kw, (fan_out, fan_in), jnp.float32, -bound, bound)
        b = jax.random.uniform(kb, (fan_out,), jnp.float32, -bound, bound)
        params.append((w, b))
    return params


def mlp_reference(x, params, eps=1e-5):
    """float64 NumPy reference of the PyTorch forward, for validation."""
    h = np.asarray(x, np.float64).reshape(x.shape[0], -1)
    n = len(params)
    for l, (w, b) in enumerate(params):
        w = np.asarray(w, np.float64)
        b = np.asarray(b, np.float64)
        h = h @ w.T + b
        if l < n - 1:
            mean = h.mean(-1, keepdims=True)
            var = ((h - mean) ** 2).mean(-1, keepdims=True)  # biased, as InstanceNorm1d
            h = np.maximum((h - mean) / np.sqrt(var + eps), 0.0)
    return h


if __name__ == "__main__":
    # Small shapes consistent with MUNIT usage: style code of shape
    # (B, input_dim, 1, 1); MLP(input_dim=8, output_dim=16, dim=32, n_blk=3).
    B, input_dim, dim, output_dim, n_blk = 2, 8, 32, 16, 3

    key = jax.random.PRNGKey(0)
    kx, kp = jax.random.split(key)
    x = jax.random.normal(kx, (B, input_dim, 1, 1), jnp.float32)  # NCHW
    params = init_mlp_params(kp, input_dim, output_dim, dim, n_blk)

    ref = mlp_reference(x, params)

    # f32 weights: exact module semantics.
    prepped_f32, hidden_dims = prepare_params(params, matmul_dtype=jnp.float32)
    out = jax.block_until_ready(mlp_forward(x, prepped_f32,
                                            hidden_dims=hidden_dims))
    assert out.shape == (B, output_dim), out.shape
    # Tolerance covers the MXU's default f32 matmul precision across TPU gens.
    assert float(np.max(np.abs(np.asarray(out, np.float64) - ref))) < 2e-2

    # bf16 weights: MXU-rate / VMEM win when `dim` is large; looser tolerance.
    prepped_bf16, hidden_dims = prepare_params(params,
                                               matmul_dtype=jnp.bfloat16)
    out_bf16 = jax.block_until_ready(mlp_forward(x, prepped_bf16,
                                                 hidden_dims=hidden_dims))
    assert out_bf16.shape == (B, output_dim), out_bf16.shape
    assert float(np.max(np.abs(np.asarray(out_bf16, np.float64) - ref))) < 1e-1

    print("KERNEL_OK")
</pallas_src>

<mosaic_0001>
module attributes {stable_mosaic.version = 11 : i64} {
  func.func @kernel(%arg0: i32, %arg1: memref<2x8xf32, #tpu.memory_space<vmem>>, %arg2: memref<8x128xf32, #tpu.memory_space<vmem>>, %arg3: memref<1x128xf32, #tpu.memory_space<vmem>>, %arg4: memref<128x128xf32, #tpu.memory_space<vmem>>, %arg5: memref<1x128xf32, #tpu.memory_space<vmem>>, %arg6: memref<128x16xf32, #tpu.memory_space<vmem>>, %arg7: memref<1x16xf32, #tpu.memory_space<vmem>>, %arg8: memref<2x16xf32, #tpu.memory_space<vmem>>) attributes {dimension_semantics = [#tpu.dimension_semantics<parallel>], iteration_bounds = array<i64: 1>, scalar_prefetch = 0 : i64, scratch_operands = 0 : i64, tpu.core_type = #tpu.core_type<tc>, window_params = [{transform_indices = @transform_0, window_bounds = array<i64: 2, 8>}, {pipeline_mode = #tpu.pipeline_mode<synchronous>, transform_indices = @transform_1, window_bounds = array<i64: 8, 128>}, {pipeline_mode = #tpu.pipeline_mode<synchronous>, transform_indices = @transform_2, window_bounds = array<i64: 1, 128>}, {pipeline_mode = #tpu.pipeline_mode<synchronous>, transform_indices = @transform_3, window_bounds = array<i64: 128, 128>}, {pipeline_mode = #tpu.pipeline_mode<synchronous>, transform_indices = @transform_4, window_bounds = array<i64: 1, 128>}, {pipeline_mode = #tpu.pipeline_mode<synchronous>, transform_indices = @transform_5, window_bounds = array<i64: 128, 16>}, {pipeline_mode = #tpu.pipeline_mode<synchronous>, transform_indices = @transform_6, window_bounds = array<i64: 1, 16>}, {transform_indices = @transform_7, window_bounds = array<i64: 2, 16>}]} {
    %c0 = arith.constant 0 : index
    %c0_0 = arith.constant 0 : index
    %0 = vector.load %arg1[%c0, %c0_0] : memref<2x8xf32, #tpu.memory_space<vmem>>, vector<2x8xf32>
    %c0_1 = arith.constant 0 : index
    %c0_2 = arith.constant 0 : index
    %1 = vector.load %arg2[%c0_1, %c0_2] : memref<8x128xf32, #tpu.memory_space<vmem>>, vector<8x128xf32>
    %c0_3 = arith.constant 0 : index
    %c0_4 = arith.constant 0 : index
    %2 = vector.load %arg3[%c0_3, %c0_4] : memref<1x128xf32, #tpu.memory_space<vmem>>, vector<1x128xf32>
    %cst = arith.constant dense<0.000000e+00> : vector<2x128xf32>
    %3 = tpu.matmul %0, %1, %cst {dimension_numbers = #tpu.dot_dimension_numbers<[1], [0], [0], [1], [0, 0, 1, 1], [], []>} : vector<2x8xf32>, vector<8x128xf32>, vector<2x128xf32> -> vector<2x128xf32>
    %4 = vector.broadcast %2 : vector<1x128xf32> to vector<2x128xf32>
    %5 = arith.addf %3, %4 : vector<2x128xf32>
    %cst_5 = arith.constant dense<0.000000e+00> : vector<2xf32>
    %6 = vector.multi_reduction <add>, %5, %cst_5 [1] : vector<2x128xf32> to vector<2xf32>
    %7 = vector.shape_cast %6 : vector<2xf32> to vector<2x1xf32>
    %cst_6 = arith.constant 3.125000e-02 : f32
    %8 = vector.broadcast %cst_6 : f32 to vector<2x1xf32>
    %9 = arith.mulf %7, %8 : vector<2x1xf32>
    %10 = vector.broadcast %9 : vector<2x1xf32> to vector<2x128xf32>
    %11 = arith.subf %5, %10 : vector<2x128xf32>
    %12 = tpu.iota {dimensions = array<i32: 1>} : vector<2x128xi32>
    %c32_i32 = arith.constant 32 : i32
    %13 = vector.broadcast %c32_i32 : i32 to vector<2x128xi32>
    %14 = arith.cmpi slt, %12, %13 : vector<2x128xi32>
    %cst_7 = arith.constant 0.000000e+00 : f32
    %15 = vector.broadcast %cst_7 : f32 to vector<2x128xf32>
    %16 = arith.select %14, %11, %15 : vector<2x128xi1>, vector<2x128xf32>
    %17 = arith.mulf %16, %16 : vector<2x128xf32>
    %cst_8 = arith.constant dense<0.000000e+00> : vector<2xf32>
    %18 = vector.multi_reduction <add>, %17, %cst_8 [1] : vector<2x128xf32> to vector<2xf32>
    %19 = vector.shape_cast %18 : vector<2xf32> to vector<2x1xf32>
    %cst_9 = arith.constant 3.125000e-02 : f32
    %20 = vector.broadcast %cst_9 : f32 to vector<2x1xf32>
    %21 = arith.mulf %19, %20 : vector<2x1xf32>
    %cst_10 = arith.constant 9.99999974E-6 : f32
    %22 = vector.broadcast %cst_10 : f32 to vector<2x1xf32>
    %23 = arith.addf %21, %22 : vector<2x1xf32>
    %24 = math.rsqrt %23 : vector<2x1xf32>
    %25 = vector.broadcast %24 : vector<2x1xf32> to vector<2x128xf32>
    %26 = arith.mulf %16, %25 : vector<2x128xf32>
    %cst_11 = arith.constant 0.000000e+00 : f32
    %27 = vector.broadcast %cst_11 : f32 to vector<2x128xf32>
    %28 = arith.maximumf %26, %27 : vector<2x128xf32>
    %c0_12 = arith.constant 0 : index
    %c0_13 = arith.constant 0 : index
    %29 = vector.load %arg4[%c0_12, %c0_13] : memref<128x128xf32, #tpu.memory_space<vmem>>, vector<128x128xf32>
    %c0_14 = arith.constant 0 : index
    %c0_15 = arith.constant 0 : index
    %30 = vector.load %arg5[%c0_14, %c0_15] : memref<1x128xf32, #tpu.memory_space<vmem>>, vector<1x128xf32>
    %cst_16 = arith.constant dense<0.000000e+00> : vector<2x128xf32>
    %31 = tpu.matmul %28, %29, %cst_16 {dimension_numbers = #tpu.dot_dimension_numbers<[1], [0], [0], [1], [0, 0, 1, 1], [], []>} : vector<2x128xf32>, vector<128x128xf32>, vector<2x128xf32> -> vector<2x128xf32>
    %32 = vector.broadcast %30 : vector<1x128xf32> to vector<2x128xf32>
    %33 = arith.addf %31, %32 : vector<2x128xf32>
    %cst_17 = arith.constant dense<0.000000e+00> : vector<2xf32>
    %34 = vector.multi_reduction <add>, %33, %cst_17 [1] : vector<2x128xf32> to vector<2xf32>
    %35 = vector.shape_cast %34 : vector<2xf32> to vector<2x1xf32>
    %cst_18 = arith.constant 3.125000e-02 : f32
    %36 = vector.broadcast %cst_18 : f32 to vector<2x1xf32>
    %37 = arith.mulf %35, %36 : vector<2x1xf32>
    %38 = vector.broadcast %37 : vector<2x1xf32> to vector<2x128xf32>
    %39 = arith.subf %33, %38 : vector<2x128xf32>
    %40 = tpu.iota {dimensions = array<i32: 1>} : vector<2x128xi32>
    %c32_i32_19 = arith.constant 32 : i32
    %41 = vector.broadcast %c32_i32_19 : i32 to vector<2x128xi32>
    %42 = arith.cmpi slt, %40, %41 : vector<2x128xi32>
    %cst_20 = arith.constant 0.000000e+00 : f32
    %43 = vector.broadcast %cst_20 : f32 to vector<2x128xf32>
    %44 = arith.select %42, %39, %43 : vector<2x128xi1>, vector<2x128xf32>
    %45 = arith.mulf %44, %44 : vector<2x128xf32>
    %cst_21 = arith.constant dense<0.000000e+00> : vector<2xf32>
    %46 = vector.multi_reduction <add>, %45, %cst_21 [1] : vector<2x128xf32> to vector<2xf32>
    %47 = vector.shape_cast %46 : vector<2xf32> to vector<2x1xf32>
    %cst_22 = arith.constant 3.125000e-02 : f32
    %48 = vector.broadcast %cst_22 : f32 to vector<2x1xf32>
    %49 = arith.mulf %47, %48 : vector<2x1xf32>
    %cst_23 = arith.constant 9.99999974E-6 : f32
    %50 = vector.broadcast %cst_23 : f32 to vector<2x1xf32>
    %51 = arith.addf %49, %50 : vector<2x1xf32>
    %52 = math.rsqrt %51 : vector<2x1xf32>
    %53 = vector.broadcast %52 : vector<2x1xf32> to vector<2x128xf32>
    %54 = arith.mulf %44, %53 : vector<2x128xf32>
    %cst_24 = arith.constant 0.000000e+00 : f32
    %55 = vector.broadcast %cst_24 : f32 to vector<2x128xf32>
    %56 = arith.maximumf %54, %55 : vector<2x128xf32>
    %c0_25 = arith.constant 0 : index
    %c0_26 = arith.constant 0 : index
    %57 = vector.load %arg6[%c0_25, %c0_26] : memref<128x16xf32, #tpu.memory_space<vmem>>, vector<128x16xf32>
    %c0_27 = arith.constant 0 : index
    %c0_28 = arith.constant 0 : index
    %58 = vector.load %arg7[%c0_27, %c0_28] : memref<1x16xf32, #tpu.memory_space<vmem>>, vector<1x16xf32>
    %cst_29 = arith.constant dense<0.000000e+00> : vector<2x16xf32>
    %59 = tpu.matmul %56, %57, %cst_29 {dimension_numbers = #tpu.dot_dimension_numbers<[1], [0], [0], [1], [0, 0, 1, 1], [], []>} : vector<2x128xf32>, vector<128x16xf32>, vector<2x16xf32> -> vector<2x16xf32>
    %60 = vector.broadcast %58 : vector<1x16xf32> to vector<2x16xf32>
    %61 = arith.addf %59, %60 : vector<2x16xf32>
    %c0_30 = arith.constant 0 : index
    %c0_31 = arith.constant 0 : index
    %62 = vector.load %arg8[%c0_30, %c0_31] : memref<2x16xf32, #tpu.memory_space<vmem>>, vector<2x16xf32>
    tpu.vector_store %arg8[%c0_30, %c0_31], %61 {strides = array<i32>} : memref<2x16xf32, #tpu.memory_space<vmem>>, vector<2x16xf32>,
    return
  }
  func.func @transform_0(%arg0: i32) -> (i32, i32) {
    %c0_i32 = arith.constant 0 : i32
    %c0_i32_0 = arith.constant 0 : i32
    return %arg0, %c0_i32 : i32, i32
  }
  func.func @transform_1(%arg0: i32) -> (i32, i32) {
    %c0_i32 = arith.constant 0 : i32
    %c0_i32_0 = arith.constant 0 : i32
    %c0_i32_1 = arith.constant 0 : i32
    return %c0_i32, %c0_i32_0 : i32, i32
  }
  func.func @transform_2(%arg0: i32) -> (i32, i32) {
    %c0_i32 = arith.constant 0 : i32
    %c0_i32_0 = arith.constant 0 : i32
    %c0_i32_1 = arith.constant 0 : i32
    return %c0_i32, %c0_i32_0 : i32, i32
  }
  func.func @transform_3(%arg0: i32) -> (i32, i32) {
    %c0_i32 = arith.constant 0 : i32
    %c0_i32_0 = arith.constant 0 : i32
    %c0_i32_1 = arith.constant 0 : i32
    return %c0_i32, %c0_i32_0 : i32, i32
  }
  func.func @transform_4(%arg0: i32) -> (i32, i32) {
    %c0_i32 = arith.constant 0 : i32
    %c0_i32_0 = arith.constant 0 : i32
    %c0_i32_1 = arith.constant 0 : i32
    return %c0_i32, %c0_i32_0 : i32, i32
  }
  func.func @transform_5(%arg0: i32) -> (i32, i32) {
    %c0_i32 = arith.constant 0 : i32
    %c0_i32_0 = arith.constant 0 : i32
    %c0_i32_1 = arith.constant 0 : i32
    return %c0_i32, %c0_i32_0 : i32, i32
  }
  func.func @transform_6(%arg0: i32) -> (i32, i32) {
    %c0_i32 = arith.constant 0 : i32
    %c0_i32_0 = arith.constant 0 : i32
    %c0_i32_1 = arith.constant 0 : i32
    return %c0_i32, %c0_i32_0 : i32, i32
  }
  func.func @transform_7(%arg0: i32) -> (i32, i32) {
    %c0_i32 = arith.constant 0 : i32
    %c0_i32_0 = arith.constant 0 : i32
    return %arg0, %c0_i32 : i32, i32
  }
}

</mosaic_0001>

<llo_original>
// kernel: mlp_forward.1
$region0: #{mlp_forward.1}
  #allocation0 [shape = 'u32[]', space=smem, size = 0x4, offset = 0x4, fixed_abs, tag = 'smem constant byte address 0x4 - core index']
  #allocation1 [shape = 'u32[144,128]{1,0:T(1,128)}', space=vmem, size = 0x12000, scoped, tag = 'internal scratch']
  %s0 = inlined_call_operand.vmem [shape: f32[2,8], index: 0, kind: input, shape index: {}]
  %s1 = inlined_call_operand.vmem [shape: f32[8,128], index: 1, kind: input, shape index: {}]
  %s2 = inlined_call_operand.vmem [shape: f32[1,128], index: 2, kind: input, shape index: {}]
  %s3 = inlined_call_operand.vmem [shape: f32[128,128], index: 3, kind: input, shape index: {}]
  %s4 = inlined_call_operand.vmem [shape: f32[1,128], index: 4, kind: input, shape index: {}]
  %s5 = inlined_call_operand.vmem [shape: f32[128,16], index: 5, kind: input, shape index: {}]
  %s6 = inlined_call_operand.vmem [shape: f32[1,16], index: 6, kind: input, shape index: {}]
  %s7 = inlined_call_operand.hbm [shape: f32[2,16], index: 7, kind: output, shape index: {}]
  %s8 = sld [smem:[#allocation0]]
  $region38: #{mlp_forward.1} parent=0
    _
  %s10 = ssub.s32 1, %s8
  %s11 = scalar_select 0, %s10, %s8
  $region1: #{mlp_forward.1} parent=0
    #allocation2 [shape = 'u8[1024]{0}', space=vmem, size = 0x400, scoped, tag = 'output window, operand 0, single buffered']
    #allocation3 [shape = 's32[1]{0}', space=sflag, size = 0x4, scoped, tag = 'scoped memory for mlp_forward.1']
    %12 = vsyncpa [#allocation3], 0
    // Predicated region
    $region2: #{mlp_forward.1} parent=1 // pred_check
      _
    $region3: #{mlp_forward.1} parent=1 // pred_check_branch
      %14 = sbr.rel (0) target = $region5
    $region4: #{mlp_forward.1} parent=1 // pred_region
      _
    $region5: #{mlp_forward.1} parent=1 // pred_fallthru
      _
    // Predicated region
    $region6: #{mlp_forward.1} parent=1 // pred_check
      _
    $region7: #{mlp_forward.1} parent=1 // pred_check_branch
      %16 = sbr.rel (0) target = $region9
    $region8: #{mlp_forward.1} parent=1 // pred_region
      _
    $region9: #{mlp_forward.1} parent=1 // pred_fallthru
      _
    // Predicated region
    $region10: #{mlp_forward.1} parent=1 // pred_check
      _
    $region11: #{mlp_forward.1} parent=1 // pred_check_branch
      %18 = sbr.rel (0) target = $region13
    $region12: #{mlp_forward.1} parent=1 // pred_region
      _
    $region13: #{mlp_forward.1} parent=1 // pred_fallthru
      _
    // Predicated region
    $region14: #{mlp_forward.1} parent=1 // pred_check
      _
    $region15: #{mlp_forward.1} parent=1 // pred_check_branch
      %20 = sbr.rel (0) target = $region17
    $region16: #{mlp_forward.1} parent=1 // pred_region
      _
    $region17: #{mlp_forward.1} parent=1 // pred_fallthru
      _
    // Predicated region
    $region18: #{mlp_forward.1} parent=1 // pred_check
      _
    $region19: #{mlp_forward.1} parent=1 // pred_check_branch
      %22 = sbr.rel (0) target = $region21
    $region20: #{mlp_forward.1} parent=1 // pred_region
      _
    $region21: #{mlp_forward.1} parent=1 // pred_fallthru
      _
    // Predicated region
    $region22: #{mlp_forward.1} parent=1 // pred_check
      _
    $region23: #{mlp_forward.1} parent=1 // pred_check_branch
      %24 = sbr.rel (0) target = $region25
    $region24: #{mlp_forward.1} parent=1 // pred_region
      _
    $region25: #{mlp_forward.1} parent=1 // pred_fallthru
      _
    // Predicated region
    $region26: #{mlp_forward.1} parent=1 // pred_check
      _
    $region27: #{mlp_forward.1} parent=1 // pred_check_branch
      %26 = sbr.rel (0) target = $region29
    $region28: #{mlp_forward.1} parent=1 // pred_region
      _
    $region29: #{mlp_forward.1} parent=1 // pred_fallthru
      _
    %v27 = vld [vmem:[%s0] sm:$0x3]
    %v28 = vld [vmem:[%s1] sm:$0xff]
    %v29 = vld [vmem:[%s2] sm:$0x1]
    %v31 = vlaneseq
    %v32 = vshrl.u32 %v31, 7
    %v33 = vsub.s32 0, %v32
    %v34 = vrot.slane %v29, %v33
    %vm36 = vcmask 64512
    %v38 = vsel %vm36, %v27, 0
    %40 = vmatprep.subr.mxu0 0.0
    %41 = vmatpush1.msra.mxu0 %v28
    %42 = vmatprep.subr.mxu0 0.0
    %43 = vmatpush1.msra.mxu0 0.0
    %44 = vmatprep.subr.mxu0 0.0
    %45 = vmatpush1.msra.mxu0 0.0
    %46 = vmatprep.subr.mxu0 0.0
    %47 = vmatpush1.msra.mxu0 0.0
    %48 = vmatprep.subr.mxu0 0.0
    %49 = vmatpush1.msra.mxu0 0.0
    %50 = vmatprep.subr.mxu0 0.0
    %51 = vmatpush1.msra.mxu0 0.0
    %52 = vmatprep.subr.mxu0 0.0
    %53 = vmatpush1.msra.mxu0 0.0
    %54 = vmatprep.subr.mxu0 0.0
    %55 = vmatpush1.msra.mxu0 0.0
    %56 = vmatprep.subr.mxu0 0.0
    %57 = vmatpush1.msra.mxu0 0.0
    %58 = vmatprep.subr.mxu0 0.0
    %59 = vmatpush1.msra.mxu0 0.0
    %60 = vmatprep.subr.mxu0 0.0
    %61 = vmatpush1.msra.mxu0 0.0
    %62 = vmatprep.subr.mxu0 0.0
    %63 = vmatpush1.msra.mxu0 0.0
    %64 = vmatprep.subr.mxu0 0.0
    %65 = vmatpush1.msra.mxu0 0.0
    %66 = vmatprep.subr.mxu0 0.0
    %67 = vmatpush1.msra.mxu0 0.0
    %68 = vmatprep.subr.mxu0 0.0
    %69 = vmatpush1.msra.mxu0 0.0
    %70 = vmatprep.subr.mxu0 0.0
    %71 = vmatpush1.msra.mxu0 0.0
    %72 = vmatprep.subr.mxu0 0.0
    %73 = vmatpush1.msra.mxu0 0.0
    %74 = vmatprep.subr.mxu0 0.0
    %75 = vmatpush1.msra.mxu0 0.0
    %76 = vmatprep.subr.mxu0 0.0
    %77 = vmatpush1.msra.mxu0 0.0
    %78 = vmatprep.subr.mxu0 0.0
    %79 = vmatpush1.msra.mxu0 0.0
    %80 = vmatprep.subr.mxu0 0.0
    %81 = vmatpush1.msra.mxu0 0.0
    %82 = vmatprep.subr.mxu0 0.0
    %83 = vmatpush1.msra.mxu0 0.0
    %84 = vmatprep.subr.mxu0 0.0
    %85 = vmatpush1.msra.mxu0 0.0
    %86 = vmatprep.subr.mxu0 0.0
    %87 = vmatpush1.msra.mxu0 0.0
    %88 = vmatprep.subr.mxu0 0.0
    %89 = vmatpush1.msra.mxu0 0.0
    %90 = vmatprep.subr.mxu0 0.0
    %91 = vmatpush1.msra.mxu0 0.0
    %92 = vmatprep.subr.mxu0 0.0
    %93 = vmatpush1.msra.mxu0 0.0
    %94 = vmatprep.subr.mxu0 0.0
    %95 = vmatpush1.msra.mxu0 0.0
    %96 = vmatprep.subr.mxu0 0.0
    %97 = vmatpush1.msra.mxu0 0.0
    %98 = vmatprep.subr.mxu0 0.0
    %99 = vmatpush1.msra.mxu0 0.0
    %100 = vmatprep.subr.mxu0 0.0
    %101 = vmatpush1.msra.mxu0 0.0
    %102 = vmatprep.subr.mxu0 0.0
    %103 = vmatpush1.msra.mxu0 0.0
    %104 = vmatprep.mubr.f32.mxu0 0.0
    %105 = vmatmul.mubr.f32.gmra.mrb[0].mxu0 %v38
    %v106 = vpop.f32.mrb[0].mxu0
    %v107 = vadd.f32 %v34, %v106
    %v108 = vpop.f32.mrb[0].mxu0
    %109 = vdwg.mxu0
    %vm110 = vcmask 1041408
    %v111 = vsel %vm110, %v107, 0.0
    %112 = vadd.xlane.f32.xlu0 %v111
    %v113 = vpop.xlane.xlu0 %112
    %v114 = vmul.f32 %v113, 0.03125
    %v115 = vsub.f32 %v107, %v114
    %v116 = vlaneseq
    %v117 = vand.u32 %v116, 127
    %vm118 = vcmp.lt.s32.totalorder %v117, 32
    %v119 = vsel %vm118, %v115, 0.0
    %v120 = vmul.f32 %v119, %v119
    %v121 = vsel %vm110, %v120, 0.0
    %122 = vadd.xlane.f32.xlu0 %v121
    %v123 = vpop.xlane.xlu0 %122
    %v124 = vmul.f32 %v123, 0.03125
    %v125 = vadd.f32 %v124, 1e-05
    %v126 = vrsqrt.pop %v125
    %v127 = vmul.f32 %v119, %v126
    %v128 = vmax.f32 %v127, 0.0
    %v129 = vld [vmem:[%s3] sm:$0xff]
    %v130 = vld [vmem:[%s3 + $0x8] sm:$0xff]
    %v131 = vld [vmem:[%s3 + $0x10] sm:$0xff]
    %v132 = vld [vmem:[%s3 + $0x18] sm:$0xff]
    %v133 = vld [vmem:[%s3 + $0x20] sm:$0xff]
    %v134 = vld [vmem:[%s3 + $0x28] sm:$0xff]
    %v135 = vld [vmem:[%s3 + $0x30] sm:$0xff]
    %v136 = vld [vmem:[%s3 + $0x38] sm:$0xff]
    %v137 = vld [vmem:[%s3 + $0x40] sm:$0xff]
    %v138 = vld [vmem:[%s3 + $0x48] sm:$0xff]
    %v139 = vld [vmem:[%s3 + $0x50] sm:$0xff]
    %v140 = vld [vmem:[%s3 + $0x58] sm:$0xff]
    %v141 = vld [vmem:[%s3 + $0x60] sm:$0xff]
    %v142 = vld [vmem:[%s3 + $0x68] sm:$0xff]
    %v143 = vld [vmem:[%s3 + $0x70] sm:$0xff]
    %v144 = vld [vmem:[%s3 + $0x78] sm:$0xff]
    %v145 = vld [vmem:[%s4] sm:$0x1]
    %v147 = vlaneseq
    %v148 = vshrl.u32 %v147, 7
    %v149 = vsub.s32 0, %v148
    %v150 = vrot.slane %v145, %v149
    %152 = vmatprep.subr.mxu0 0.0
    %153 = vmatpush1.msra.mxu0 %v129
    %154 = vmatprep.subr.mxu0 0.0
    %155 = vmatpush1.msra.mxu0 %v130
    %156 = vmatprep.subr.mxu0 0.0
    %157 = vmatpush1.msra.mxu0 %v131
    %158 = vmatprep.subr.mxu0 0.0
    %159 = vmatpush1.msra.mxu0 %v132
    %160 = vmatprep.subr.mxu0 0.0
    %161 = vmatpush1.msra.mxu0 %v133
    %162 = vmatprep.subr.mxu0 0.0
    %163 = vmatpush1.msra.mxu0 %v134
    %164 = vmatprep.subr.mxu0 0.0
    %165 = vmatpush1.msra.mxu0 %v135
    %166 = vmatprep.subr.mxu0 0.0
    %167 = vmatpush1.msra.mxu0 %v136
    %168 = vmatprep.subr.mxu0 0.0
    %169 = vmatpush1.msra.mxu0 %v137
    %170 = vmatprep.subr.mxu0 0.0
    %171 = vmatpush1.msra.mxu0 %v138
    %172 = vmatprep.subr.mxu0 0.0
    %173 = vmatpush1.msra.mxu0 %v139
    %174 = vmatprep.subr.mxu0 0.0
    %175 = vmatpush1.msra.mxu0 %v140
    %176 = vmatprep.subr.mxu0 0.0
    %177 = vmatpush1.msra.mxu0 %v141
    %178 = vmatprep.subr.mxu0 0.0
    %179 = vmatpush1.msra.mxu0 %v142
    %180 = vmatprep.subr.mxu0 0.0
    %181 = vmatpush1.msra.mxu0 %v143
    %182 = vmatprep.subr.mxu0 0.0
    %183 = vmatpush1.msra.mxu0 %v144
    %184 = vmatprep.subr.mxu0 0.0
    %185 = vmatpush1.msra.mxu0 0.0
    %186 = vmatprep.subr.mxu0 0.0
    %187 = vmatpush1.msra.mxu0 0.0
    %188 = vmatprep.subr.mxu0 0.0
    %189 = vmatpush1.msra.mxu0 0.0
    %190 = vmatprep.subr.mxu0 0.0
    %191 = vmatpush1.msra.mxu0 0.0
    %192 = vmatprep.subr.mxu0 0.0
    %193 = vmatpush1.msra.mxu0 0.0
    %194 = vmatprep.subr.mxu0 0.0
    %195 = vmatpush1.msra.mxu0 0.0
    %196 = vmatprep.subr.mxu0 0.0
    %197 = vmatpush1.msra.mxu0 0.0
    %198 = vmatprep.subr.mxu0 0.0
    %199 = vmatpush1.msra.mxu0 0.0
    %200 = vmatprep.subr.mxu0 0.0
    %201 = vmatpush1.msra.mxu0 0.0
    %202 = vmatprep.subr.mxu0 0.0
    %203 = vmatpush1.msra.mxu0 0.0
    %204 = vmatprep.subr.mxu0 0.0
    %205 = vmatpush1.msra.mxu0 0.0
    %206 = vmatprep.subr.mxu0 0.0
    %207 = vmatpush1.msra.mxu0 0.0
    %208 = vmatprep.subr.mxu0 0.0
    %209 = vmatpush1.msra.mxu0 0.0
    %210 = vmatprep.subr.mxu0 0.0
    %211 = vmatpush1.msra.mxu0 0.0
    %212 = vmatprep.subr.mxu0 0.0
    %213 = vmatpush1.msra.mxu0 0.0
    %214 = vmatprep.subr.mxu0 0.0
    %215 = vmatpush1.msra.mxu0 0.0
    %216 = vmatprep.mubr.f32.mxu0 0.0
    %217 = vmatmul.mubr.f32.gmra.mrb[0].mxu0 %v128
    %v218 = vpop.f32.mrb[0].mxu0
    %v219 = vadd.f32 %v150, %v218
    %v220 = vpop.f32.mrb[0].mxu0
    %221 = vdwg.mxu0
    %v222 = vsel %vm110, %v219, 0.0
    %223 = vadd.xlane.f32.xlu0 %v222
    %v224 = vpop.xlane.xlu0 %223
    %v225 = vmul.f32 %v224, 0.03125
    %v226 = vsub.f32 %v219, %v225
    %v227 = vsel %vm118, %v226, 0.0
    %v228 = vmul.f32 %v227, %v227
    %v229 = vsel %vm110, %v228, 0.0
    %230 = vadd.xlane.f32.xlu0 %v229
    %v231 = vpop.xlane.xlu0 %230
    %v232 = vmul.f32 %v231, 0.03125
    %v233 = vadd.f32 %v232, 1e-05
    %v234 = vrsqrt.pop %v233
    %v235 = vmul.f32 %v227, %v234
    %v236 = vmax.f32 %v235, 0.0
    %v237 = vld [vmem:[%s5] sm:$0xff]
    %v238 = vld [vmem:[%s5 + $0x8] sm:$0xff]
    %v239 = vld [vmem:[%s5 + $0x10] sm:$0xff]
    %v240 = vld [vmem:[%s5 + $0x18] sm:$0xff]
    %v241 = vld [vmem:[%s5 + $0x20] sm:$0xff]
    %v242 = vld [vmem:[%s5 + $0x28] sm:$0xff]
    %v243 = vld [vmem:[%s5 + $0x30] sm:$0xff]
    %v244 = vld [vmem:[%s5 + $0x38] sm:$0xff]
    %v245 = vld [vmem:[%s5 + $0x40] sm:$0xff]
    %v246 = vld [vmem:[%s5 + $0x48] sm:$0xff]
    %v247 = vld [vmem:[%s5 + $0x50] sm:$0xff]
    %v248 = vld [vmem:[%s5 + $0x58] sm:$0xff]
    %v249 = vld [vmem:[%s5 + $0x60] sm:$0xff]
    %v250 = vld [vmem:[%s5 + $0x68] sm:$0xff]
    %v251 = vld [vmem:[%s5 + $0x70] sm:$0xff]
    %v252 = vld [vmem:[%s5 + $0x78] sm:$0xff]
    %v253 = vld [vmem:[%s6] sm:$0x1]
    %v255 = vlaneseq
    %v256 = vshrl.u32 %v255, 7
    %v257 = vsub.s32 0, %v256
    %v258 = vrot.slane %v253, %v257
    %260 = vmatprep.subr.mxu0 0.0
    %261 = vmatpush1.msra.mxu0 %v237
    %262 = vmatprep.subr.mxu0 0.0
    %263 = vmatpush1.msra.mxu0 %v238
    %264 = vmatprep.subr.mxu0 0.0
    %265 = vmatpush1.msra.mxu0 %v239
    %266 = vmatprep.subr.mxu0 0.0
    %267 = vmatpush1.msra.mxu0 %v240
    %268 = vmatprep.subr.mxu0 0.0
    %269 = vmatpush1.msra.mxu0 %v241
    %270 = vmatprep.subr.mxu0 0.0
    %271 = vmatpush1.msra.mxu0 %v242
    %272 = vmatprep.subr.mxu0 0.0
    %273 = vmatpush1.msra.mxu0 %v243
    %274 = vmatprep.subr.mxu0 0.0
    %275 = vmatpush1.msra.mxu0 %v244
    %276 = vmatprep.subr.mxu0 0.0
    %277 = vmatpush1.msra.mxu0 %v245
    %278 = vmatprep.subr.mxu0 0.0
    %279 = vmatpush1.msra.mxu0 %v246
    %280 = vmatprep.subr.mxu0 0.0
    %281 = vmatpush1.msra.mxu0 %v247
    %282 = vmatprep.subr.mxu0 0.0
    %283 = vmatpush1.msra.mxu0 %v248
    %284 = vmatprep.subr.mxu0 0.0
    %285 = vmatpush1.msra.mxu0 %v249
    %286 = vmatprep.subr.mxu0 0.0
    %287 = vmatpush1.msra.mxu0 %v250
    %288 = vmatprep.subr.mxu0 0.0
    %289 = vmatpush1.msra.mxu0 %v251
    %290 = vmatprep.subr.mxu0 0.0
    %291 = vmatpush1.msra.mxu0 %v252
    %292 = vmatprep.subr.mxu0 0.0
    %293 = vmatpush1.msra.mxu0 0.0
    %294 = vmatprep.subr.mxu0 0.0
    %295 = vmatpush1.msra.mxu0 0.0
    %296 = vmatprep.subr.mxu0 0.0
    %297 = vmatpush1.msra.mxu0 0.0
    %298 = vmatprep.subr.mxu0 0.0
    %299 = vmatpush1.msra.mxu0 0.0
    %300 = vmatprep.subr.mxu0 0.0
    %301 = vmatpush1.msra.mxu0 0.0
    %302 = vmatprep.subr.mxu0 0.0
    %303 = vmatpush1.msra.mxu0 0.0
    %304 = vmatprep.subr.mxu0 0.0
    %305 = vmatpush1.msra.mxu0 0.0
    %306 = vmatprep.subr.mxu0 0.0
    %307 = vmatpush1.msra.mxu0 0.0
    %308 = vmatprep.subr.mxu0 0.0
    %309 = vmatpush1.msra.mxu0 0.0
    %310 = vmatprep.subr.mxu0 0.0
    %311 = vmatpush1.msra.mxu0 0.0
    %312 = vmatprep.subr.mxu0 0.0
    %313 = vmatpush1.msra.mxu0 0.0
    %314 = vmatprep.subr.mxu0 0.0
    %315 = vmatpush1.msra.mxu0 0.0
    %316 = vmatprep.subr.mxu0 0.0
    %317 = vmatpush1.msra.mxu0 0.0
    %318 = vmatprep.subr.mxu0 0.0
    %319 = vmatpush1.msra.mxu0 0.0
    %320 = vmatprep.subr.mxu0 0.0
    %321 = vmatpush1.msra.mxu0 0.0
    %322 = vmatprep.subr.mxu0 0.0
    %323 = vmatpush1.msra.mxu0 0.0
    %324 = vmatprep.mubr.f32.mxu0 0.0
    %325 = vmatmul.mubr.f32.gmra.mrb[0].mxu0 %v236
    %v326 = vpop.f32.mrb[0].mxu0
    %v327 = vadd.f32 %v258, %v326
    %v328 = vpop.f32.mrb[0].mxu0
    %329 = vdwg.mxu0
    %vm330 = vcmask 123904
    %331 = vst.msk [vmem:[#allocation2] sm:$0x3] %vm330, %v327
    // Predicated region
    $region30: #{mlp_forward.1} parent=1 // pred_check
      _
    $region31: #{mlp_forward.1} parent=1 // pred_check_branch
      %333 = sbr.rel (0) target = $region33
    $region32: #{mlp_forward.1} parent=1 // pred_region
      %s335 = ssub.s32 32, 32
      %336 = vsyncadd [#allocation3], %s335
      %s338 = sshll.u32 [#allocation2], 4
      %s339 = int_to_ptr.vmem [resolvable:$true] %s338
      %341 = dma.vmem_to_hbm [thread:$0]  %s339, 32, %s7, [#allocation3]
    $region33: #{mlp_forward.1} parent=1 // pred_fallthru
      _
    // Predicated region
    $region34: #{mlp_forward.1} parent=1 // pred_check
      _
    $region35: #{mlp_forward.1} parent=1 // pred_check_branch
      %343 = sbr.rel (0) target = $region37
    $region36: #{mlp_forward.1} parent=1 // pred_region
      %344 = dma.done [#allocation3], 32
    $region37: #{mlp_forward.1} parent=1 // pred_fallthru
      _
    %345 = vsyncpa [#allocation3], 1

</llo_original>
